<compile_context>
chip_gen: v6e
topology: v6e:2x2x1
jax: 0.10.0
libtpu: 0.0.40
codegen_flags: <defaults>
</compile_context>

<pallas_src>
import functools

import jax
import jax.numpy as jnp
from jax.experimental import pallas as pl
from jax.experimental.pallas import tpu as pltpu


def _round_up(n, m):
    return ((n + m - 1) // m) * m


# ----------------------------- Pallas kernel ------------------------------ #
def moe_kernel(flags_ref, x_ref, wsum_ref, bssum_ref, wp_ref, bp_ref, g_ref,
               o_ref, *, wp_resident):
    """grid = (token_tiles, experts); expert axis is the innermost reduction.

    flags_ref: [num_tiles, E] i32 (SMEM scalar prefetch) - tile routed to e?
    x_ref    : [tm, H]      bf16 token tile (resident across the expert axis)
    wsum_ref : [H, H]       bf16 summed shared weight, [in, out] layout
    bssum_ref: [1, H]       f32  summed shared bias
    wp_ref   : [E, H, H] (resident) or [1, H, H] (streamed) bf16, [in, out]
    bp_ref   : [E, 1, H]    f32  sparse-expert biases (resident, tiny)
    g_ref    : [E, tm, 1]   f32  dense routing weights for this token tile
    o_ref    : [tm, H]      f32  output block == accumulator over experts
    """
    i = pl.program_id(0)
    e = pl.program_id(1)

    @pl.when(e == 0)
    def _():
        # Collapsed shared path: sum_e (x @ Ws_e^T + bs_e) == x @ Wsum + bs_sum
        shared = jnp.dot(x_ref[...], wsum_ref[...],
                         preferred_element_type=jnp.float32)
        o_ref[...] = shared + bssum_ref[...]

    @pl.when(flags_ref[i, e] != 0)
    def _():
        # Sparse path for expert e; gate is 0 for unselected tokens so the
        # dense weighted sum equals the top-k dispatch exactly.
        w_e = wp_ref[e] if wp_resident else wp_ref[0]
        expert = jnp.dot(x_ref[...], w_e, preferred_element_type=jnp.float32)
        o_ref[...] += (expert + bp_ref[e]) * g_ref[e]     # [tm,1] lane-bcast


# ------------------------------ JAX wrapper -------------------------------- #
@functools.partial(
    jax.jit,
    static_argnames=("top_k", "tm", "compute_dtype", "buffered_const"))
def moe_forward(x, params, *, top_k, tm=256, compute_dtype=jnp.bfloat16,
                buffered_const=True):
    """Forward pass of MOE (target=None path).

    x: [bsz, seq_len, H] float32
    Returns: (out [bsz, seq_len, H], top_k_index [T, top_k],
              routing_probs [T, E])
    """
    bsz, seq_len, H = x.shape
    T = bsz * seq_len
    x2d = x.reshape(T, H)

    ws, bs = params["shared_w"], params["shared_b"]     # [E,H,H], [E,H]
    wp, bp = params["sparse_w"], params["sparse_b"]     # [E,H,H], [E,H]
    gw, gb = params["gate_w"], params["gate_b"]         # [E,H],   [E]
    E = ws.shape[0]
    itemsize = jnp.dtype(compute_dtype).itemsize

    # ---- routing (tiny glue; matches SparseMOE.moe_router) ----
    logits = x2d @ gw.T + gb                            # [T, E]
    routing_probs = jax.nn.softmax(logits, axis=-1)
    top_k_probs, top_k_index = jax.lax.top_k(routing_probs, top_k)
    top_k_probs = top_k_probs / jnp.sum(top_k_probs, axis=1, keepdims=True)
    # Dense per-(token, expert) routing weight (0 for unselected experts).
    dense_gate = jnp.sum(
        jax.nn.one_hot(top_k_index, E, dtype=jnp.float32)
        * top_k_probs[..., None], axis=1)               # [T, E] f32

    # ---- algebraic folding of the shared path + pre-transposed weights ----
    ws_sum_t = jnp.sum(ws, axis=0).T                    # [H_in, H_out]
    bs_sum = jnp.sum(bs, axis=0).reshape(1, H)          # [1, H]
    wp_t = jnp.transpose(wp, (0, 2, 1))                 # [E, H_in, H_out]

    # ---- token tiling / padding (sublane / MXU aligned) ----
    tm_eff = min(tm, _round_up(T, 8))                   # multiple of 8
    Tp = _round_up(T, tm_eff)
    pad = Tp - T
    x_pad = jnp.pad(x2d, ((0, pad), (0, 0))) if pad else x2d
    gate_pad = jnp.pad(dense_gate, ((0, pad), (0, 0))) if pad else dense_gate
    num_tiles = Tp // tm_eff

    x_cd = x_pad.astype(compute_dtype)
    wsum_cd = ws_sum_t.astype(compute_dtype)
    wp_cd = wp_t.astype(compute_dtype)
    bssum_f32 = bs_sum.astype(jnp.float32)
    bp3 = bp.astype(jnp.float32).reshape(E, 1, H)       # [E, 1, H] (tiny)
    g3 = jnp.transpose(gate_pad, (1, 0))[:, :, None]    # [E, Tp, 1] f32

    # Per-(tile, expert) "any token routed" flag -> skip unrouted experts.
    flags = (jnp.max(gate_pad.reshape(num_tiles, tm_eff, E), axis=1) > 0
             ).astype(jnp.int32)                        # [num_tiles, E]

    # ---- VMEM residency decision for sparse expert weights ----
    wp_resident = (E * H * H * itemsize) <= (24 * 1024 * 1024)

    nbuf_const = 1 if buffered_const else 2
    vmem_bytes = (
        2 * tm_eff * H * itemsize                          # x (double-buffered)
        + nbuf_const * H * H * itemsize                    # Wsum
        + nbuf_const * H * 4                               # bs_sum
        + (nbuf_const * E * H * H * itemsize if wp_resident
           else 2 * H * H * itemsize)                      # Wp
        + nbuf_const * E * H * 4                           # bp
        + 2 * E * tm_eff * 4                               # gates
        + 2 * tm_eff * H * 4)                              # out accumulator
    vmem_limit = int(min(64 * 1024 * 1024,
                         max(32 * 1024 * 1024,
                             int(1.5 * vmem_bytes) + (2 << 20))))

    def _const_spec(shape):
        zeros = (0,) * len(shape)
        idx = lambda i, e, flags_ref, _z=zeros: _z
        if buffered_const:
            return pl.BlockSpec(shape, idx, pipeline_mode=pl.Buffered(1))
        return pl.BlockSpec(shape, idx)

    if wp_resident:
        wp_spec = _const_spec((E, H, H))
    else:
        wp_spec = pl.BlockSpec((1, H, H), lambda i, e, flags_ref: (e, 0, 0))

    in_specs = [
        pl.BlockSpec((tm_eff, H), lambda i, e, flags_ref: (i, 0)),   # x tile
        _const_spec((H, H)),                                         # Wsum
        _const_spec((1, H)),                                         # bs_sum
        wp_spec,                                                     # Wp
        _const_spec((E, 1, H)),                                      # bp
        pl.BlockSpec((E, tm_eff, 1), lambda i, e, flags_ref: (0, i, 0)),
    ]

    out_pad = pl.pallas_call(
        functools.partial(moe_kernel, wp_resident=wp_resident),
        out_shape=jax.ShapeDtypeStruct((Tp, H), jnp.float32),
        grid_spec=pltpu.PrefetchScalarGridSpec(
            num_scalar_prefetch=1,
            grid=(num_tiles, E),
            in_specs=in_specs,
            out_specs=pl.BlockSpec((tm_eff, H),
                                   lambda i, e, flags_ref: (i, 0)),
        ),
        compiler_params=pltpu.CompilerParams(
            dimension_semantics=("parallel", "arbitrary"),
            vmem_limit_bytes=vmem_limit),
    )(flags, x_cd, wsum_cd, bssum_f32, wp_cd, bp3, g3)

    out = out_pad[:T].astype(x.dtype).reshape(bsz, seq_len, H)
    return out, top_k_index, routing_probs


def moe_module_forward(x, params, *, top_k, target=None):
    """Mirrors MOE.forward: returns (out, loss, mse_loss, aux_loss)."""
    try:
        out, top_k_index, routing_probs = moe_forward(
            x, params, top_k=top_k, buffered_const=True)
        out = jax.block_until_ready(out)
    except Exception:
        # Safety net for JAX versions without BlockSpec pipeline_mode support.
        out, top_k_index, routing_probs = moe_forward(
            x, params, top_k=top_k, buffered_const=False)
        out = jax.block_until_ready(out)

    if target is None:
        return out, None, None, None
    E = params["gate_w"].shape[0]
    mse_loss = jnp.mean((out - target) ** 2)
    mask = jax.nn.one_hot(top_k_index, E, dtype=jnp.float32).reshape(-1, E)
    fi = mask.mean(axis=0) * E
    pi = routing_probs.mean(axis=0)
    aux_loss = jnp.sum(fi * pi)
    loss = mse_loss + 0.01 * aux_loss
    return out, loss, mse_loss, aux_loss


# ------------------------- pure-JAX reference ------------------------------ #
def moe_reference(x, params, *, top_k):
    bsz, seq_len, H = x.shape
    x2d = x.reshape(-1, H)
    ws, bs = params["shared_w"], params["shared_b"]
    wp, bp = params["sparse_w"], params["sparse_b"]
    gw, gb = params["gate_w"], params["gate_b"]
    E = ws.shape[0]

    shared = (jnp.einsum("th,eoh->eto", x2d, ws) + bs[:, None, :]).sum(axis=0)

    logits = x2d @ gw.T + gb
    probs = jax.nn.softmax(logits, axis=-1)
    tkp, tki = jax.lax.top_k(probs, top_k)
    tkp = tkp / jnp.sum(tkp, axis=1, keepdims=True)
    dense_gate = jnp.sum(
        jax.nn.one_hot(tki, E, dtype=x.dtype) * tkp[..., None], axis=1)

    expert_out = jnp.einsum("th,eoh->eto", x2d, wp) + bp[:, None, :]
    sparse = jnp.sum(expert_out * dense_gate.T[:, :, None], axis=0)
    return (shared + sparse).reshape(bsz, seq_len, H)


# --------------------------------- main ------------------------------------ #
def init_params(key, n_experts, hidden):
    ks = jax.random.split(key, 6)
    bound = 1.0 / jnp.sqrt(hidden)
    u = lambda k, shape: jax.random.uniform(
        k, shape, jnp.float32, -bound, bound)
    return {
        "shared_w": u(ks[0], (n_experts, hidden, hidden)),   # [E, out, in]
        "shared_b": u(ks[1], (n_experts, hidden)),
        "sparse_w": u(ks[2], (n_experts, hidden, hidden)),   # [E, out, in]
        "sparse_b": u(ks[3], (n_experts, hidden)),
        "gate_w": u(ks[4], (n_experts, hidden)),
        "gate_b": u(ks[5], (n_experts,)),
    }


if __name__ == "__main__":
    bsz, seq_len, hidden = 2, 8, 32
    n_experts, top_k = 8, 2

    key = jax.random.PRNGKey(0)
    k_params, k_x = jax.random.split(key)
    params = init_params(k_params, n_experts, hidden)
    x = jax.random.normal(k_x, (bsz, seq_len, hidden), dtype=jnp.float32)

    out, loss, mse_loss, aux_loss = moe_module_forward(
        x, params, top_k=top_k, target=None)
    out = jax.block_until_ready(out)

    ref = moe_reference(x, params, top_k=top_k)
    assert out.shape == (bsz, seq_len, hidden)
    max_err = float(jnp.max(jnp.abs(out - ref)))
    # bf16 MXU inputs vs f32 reference -> loosened tolerance (validated at
    # this H; re-check tolerance when scaling H, or use compute_dtype=f32).
    assert jnp.allclose(out, ref, atol=5e-2, rtol=5e-2), f"max err {max_err}"

    print("KERNEL_OK")
</pallas_src>

<mosaic_0001>
module attributes {stable_mosaic.version = 11 : i64} {
  func.func @moe_kernel(%arg0: i32, %arg1: i32, %arg2: memref<1x8xi32, #tpu.memory_space<smem>>, %arg3: memref<16x32xbf16, #tpu.memory_space<vmem>>, %arg4: memref<32x32xbf16, #tpu.memory_space<vmem>>, %arg5: memref<1x32xf32, #tpu.memory_space<vmem>>, %arg6: memref<8x32x32xbf16, #tpu.memory_space<vmem>>, %arg7: memref<8x1x32xf32, #tpu.memory_space<vmem>>, %arg8: memref<8x16x1xf32, #tpu.memory_space<vmem>>, %arg9: memref<16x32xf32, #tpu.memory_space<vmem>>) attributes {dimension_semantics = [#tpu.dimension_semantics<parallel>, #tpu.dimension_semantics<arbitrary>], iteration_bounds = array<i64: 1, 8>, scalar_prefetch = 1 : i64, scratch_operands = 0 : i64, tpu.core_type = #tpu.core_type<tc>, window_params = [{transform_indices = @transform_0, window_bounds = array<i64: 16, 32>}, {pipeline_mode = #tpu.pipeline_mode<synchronous>, transform_indices = @transform_1, window_bounds = array<i64: 32, 32>}, {pipeline_mode = #tpu.pipeline_mode<synchronous>, transform_indices = @transform_2, window_bounds = array<i64: 1, 32>}, {pipeline_mode = #tpu.pipeline_mode<synchronous>, transform_indices = @transform_3, window_bounds = array<i64: 8, 32, 32>}, {pipeline_mode = #tpu.pipeline_mode<synchronous>, transform_indices = @transform_4, window_bounds = array<i64: 8, 1, 32>}, {transform_indices = @transform_5, window_bounds = array<i64: 8, 16, 1>}, {transform_indices = @transform_6, window_bounds = array<i64: 16, 32>}]} {
    %c0_i32 = arith.constant 0 : i32
    %0 = arith.cmpi eq, %arg1, %c0_i32 : i32
    %1 = arith.extui %0 : i1 to i32
    %c0_i32_0 = arith.constant 0 : i32
    %2 = arith.cmpi ne, %1, %c0_i32_0 : i32
    scf.if %2 {
      %c0 = arith.constant 0 : index
      %c0_3 = arith.constant 0 : index
      %9 = vector.load %arg3[%c0, %c0_3] : memref<16x32xbf16, #tpu.memory_space<vmem>>, vector<16x32xbf16>
      %c0_4 = arith.constant 0 : index
      %c0_5 = arith.constant 0 : index
      %10 = vector.load %arg4[%c0_4, %c0_5] : memref<32x32xbf16, #tpu.memory_space<vmem>>, vector<32x32xbf16>
      %cst = arith.constant dense<0.000000e+00> : vector<16x32xf32>
      %11 = tpu.matmul %9, %10, %cst {dimension_numbers = #tpu.dot_dimension_numbers<[1], [0], [0], [1], [0, 0, 1, 1], [], []>} : vector<16x32xbf16>, vector<32x32xbf16>, vector<16x32xf32> -> vector<16x32xf32>
      %c0_6 = arith.constant 0 : index
      %c0_7 = arith.constant 0 : index
      %12 = vector.load %arg5[%c0_6, %c0_7] : memref<1x32xf32, #tpu.memory_space<vmem>>, vector<1x32xf32>
      %13 = vector.broadcast %12 : vector<1x32xf32> to vector<16x32xf32>
      %14 = arith.addf %11, %13 : vector<16x32xf32>
      %c0_8 = arith.constant 0 : index
      %c0_9 = arith.constant 0 : index
      %15 = vector.load %arg9[%c0_8, %c0_9] : memref<16x32xf32, #tpu.memory_space<vmem>>, vector<16x32xf32>
      tpu.vector_store %arg9[%c0_8, %c0_9], %14 {strides = array<i32>} : memref<16x32xf32, #tpu.memory_space<vmem>>, vector<16x32xf32>,
    } else {
    }
    %3 = arith.index_cast %arg0 : i32 to index
    %4 = arith.index_cast %arg1 : i32 to index
    %5 = memref.load %arg2[%3, %4] : memref<1x8xi32, #tpu.memory_space<smem>>
    %c0_i32_1 = arith.constant 0 : i32
    %6 = arith.cmpi ne, %5, %c0_i32_1 : i32
    %7 = arith.extui %6 : i1 to i32
    %c0_i32_2 = arith.constant 0 : i32
    %8 = arith.cmpi ne, %7, %c0_i32_2 : i32
    scf.if %8 {
      %9 = arith.index_cast %arg1 : i32 to index
      %c0 = arith.constant 0 : index
      %c0_3 = arith.constant 0 : index
      %10 = vector.load %arg6[%9, %c0, %c0_3] : memref<8x32x32xbf16, #tpu.memory_space<vmem>>, vector<1x32x32xbf16>
      %11 = vector.shape_cast %10 : vector<1x32x32xbf16> to vector<32x32xbf16>
      %c0_4 = arith.constant 0 : index
      %c0_5 = arith.constant 0 : index
      %12 = vector.load %arg3[%c0_4, %c0_5] : memref<16x32xbf16, #tpu.memory_space<vmem>>, vector<16x32xbf16>
      %cst = arith.constant dense<0.000000e+00> : vector<16x32xf32>
      %13 = tpu.matmul %12, %11, %cst {dimension_numbers = #tpu.dot_dimension_numbers<[1], [0], [0], [1], [0, 0, 1, 1], [], []>} : vector<16x32xbf16>, vector<32x32xbf16>, vector<16x32xf32> -> vector<16x32xf32>
      %c0_6 = arith.constant 0 : index
      %c0_7 = arith.constant 0 : index
      %14 = vector.load %arg9[%c0_6, %c0_7] : memref<16x32xf32, #tpu.memory_space<vmem>>, vector<16x32xf32>
      %15 = arith.index_cast %arg1 : i32 to index
      %c0_8 = arith.constant 0 : index
      %c0_9 = arith.constant 0 : index
      %16 = vector.load %arg7[%15, %c0_8, %c0_9] : memref<8x1x32xf32, #tpu.memory_space<vmem>>, vector<1x1x32xf32>
      %17 = vector.shape_cast %16 : vector<1x1x32xf32> to vector<1x32xf32>
      %18 = vector.broadcast %17 : vector<1x32xf32> to vector<16x32xf32>
      %19 = arith.addf %13, %18 : vector<16x32xf32>
      %20 = arith.index_cast %arg1 : i32 to index
      %c0_10 = arith.constant 0 : index
      %c0_11 = arith.constant 0 : index
      %21 = vector.load %arg8[%20, %c0_10, %c0_11] : memref<8x16x1xf32, #tpu.memory_space<vmem>>, vector<1x16x1xf32>
      %22 = vector.shape_cast %21 : vector<1x16x1xf32> to vector<16x1xf32>
      %23 = vector.broadcast %22 : vector<16x1xf32> to vector<16x32xf32>
      %24 = arith.mulf %19, %23 : vector<16x32xf32>
      %25 = arith.addf %14, %24 : vector<16x32xf32>
      %c0_12 = arith.constant 0 : index
      %c0_13 = arith.constant 0 : index
      %26 = vector.load %arg9[%c0_12, %c0_13] : memref<16x32xf32, #tpu.memory_space<vmem>>, vector<16x32xf32>
      tpu.vector_store %arg9[%c0_12, %c0_13], %25 {strides = array<i32>} : memref<16x32xf32, #tpu.memory_space<vmem>>, vector<16x32xf32>,
    } else {
    }
    return
  }
  func.func @transform_0(%arg0: i32, %arg1: i32, %arg2: memref<1x8xi32, #tpu.memory_space<smem>>) -> (i32, i32) {
    %c0_i32 = arith.constant 0 : i32
    %c0_i32_0 = arith.constant 0 : i32
    return %arg0, %c0_i32 : i32, i32
  }
  func.func @transform_1(%arg0: i32, %arg1: i32, %arg2: memref<1x8xi32, #tpu.memory_space<smem>>) -> (i32, i32) {
    %c0_i32 = arith.constant 0 : i32
    %c0_i32_0 = arith.constant 0 : i32
    %c0_i32_1 = arith.constant 0 : i32
    return %c0_i32, %c0_i32_0 : i32, i32
  }
  func.func @transform_2(%arg0: i32, %arg1: i32, %arg2: memref<1x8xi32, #tpu.memory_space<smem>>) -> (i32, i32) {
    %c0_i32 = arith.constant 0 : i32
    %c0_i32_0 = arith.constant 0 : i32
    %c0_i32_1 = arith.constant 0 : i32
    return %c0_i32, %c0_i32_0 : i32, i32
  }
  func.func @transform_3(%arg0: i32, %arg1: i32, %arg2: memref<1x8xi32, #tpu.memory_space<smem>>) -> (i32, i32, i32) {
    %c0_i32 = arith.constant 0 : i32
    %c0_i32_0 = arith.constant 0 : i32
    %c0_i32_1 = arith.constant 0 : i32
    %c0_i32_2 = arith.constant 0 : i32
    return %c0_i32, %c0_i32_0, %c0_i32_1 : i32, i32, i32
  }
  func.func @transform_4(%arg0: i32, %arg1: i32, %arg2: memref<1x8xi32, #tpu.memory_space<smem>>) -> (i32, i32, i32) {
    %c0_i32 = arith.constant 0 : i32
    %c0_i32_0 = arith.constant 0 : i32
    %c0_i32_1 = arith.constant 0 : i32
    %c0_i32_2 = arith.constant 0 : i32
    return %c0_i32, %c0_i32_0, %c0_i32_1 : i32, i32, i32
  }
  func.func @transform_5(%arg0: i32, %arg1: i32, %arg2: memref<1x8xi32, #tpu.memory_space<smem>>) -> (i32, i32, i32) {
    %c0_i32 = arith.constant 0 : i32
    %c0_i32_0 = arith.constant 0 : i32
    %c0_i32_1 = arith.constant 0 : i32
    return %c0_i32, %arg0, %c0_i32_0 : i32, i32, i32
  }
  func.func @transform_6(%arg0: i32, %arg1: i32, %arg2: memref<1x8xi32, #tpu.memory_space<smem>>) -> (i32, i32) {
    %c0_i32 = arith.constant 0 : i32
    %c0_i32_0 = arith.constant 0 : i32
    return %arg0, %c0_i32 : i32, i32
  }
}

module attributes {stable_mosaic.version = 11 : i64} {
  func.func @moe_kernel(%arg0: i32, %arg1: i32, %arg2: memref<1x8xi32, #tpu.memory_space<smem>>, %arg3: memref<16x32xbf16, #tpu.memory_space<vmem>>, %arg4: memref<32x32xbf16, #tpu.memory_space<vmem>>, %arg5: memref<1x32xf32, #tpu.memory_space<vmem>>, %arg6: memref<8x32x32xbf16, #tpu.memory_space<vmem>>, %arg7: memref<8x1x32xf32, #tpu.memory_space<vmem>>, %arg8: memref<8x16x1xf32, #tpu.memory_space<vmem>>, %arg9: memref<16x32xf32, #tpu.memory_space<vmem>>) attributes {dimension_semantics = [#tpu.dimension_semantics<parallel>, #tpu.dimension_semantics<arbitrary>], iteration_bounds = array<i64: 1, 8>, scalar_prefetch = 1 : i64, scratch_operands = 0 : i64, tpu.core_type = #tpu.core_type<tc>, window_params = [{transform_indices = @transform_0, window_bounds = array<i64: 16, 32>}, {pipeline_mode = #tpu.pipeline_mode<synchronous>, transform_indices = @transform_1, window_bounds = array<i64: 32, 32>}, {pipeline_mode = #tpu.pipeline_mode<synchronous>, transform_indices = @transform_2, window_bounds = array<i64: 1, 32>}, {pipeline_mode = #tpu.pipeline_mode<synchronous>, transform_indices = @transform_3, window_bounds = array<i64: 8, 32, 32>}, {pipeline_mode = #tpu.pipeline_mode<synchronous>, transform_indices = @transform_4, window_bounds = array<i64: 8, 1, 32>}, {transform_indices = @transform_5, window_bounds = array<i64: 8, 16, 1>}, {transform_indices = @transform_6, window_bounds = array<i64: 16, 32>}]} {
    %c0_i32 = arith.constant 0 : i32
    %0 = arith.cmpi eq, %arg1, %c0_i32 : i32
    %1 = arith.extui %0 : i1 to i32
    %c0_i32_0 = arith.constant 0 : i32
    %2 = arith.cmpi ne, %1, %c0_i32_0 : i32
    scf.if %2 {
      %c0 = arith.constant 0 : index
      %c0_3 = arith.constant 0 : index
      %9 = vector.load %arg3[%c0, %c0_3] : memref<16x32xbf16, #tpu.memory_space<vmem>>, vector<16x32xbf16>
      %c0_4 = arith.constant 0 : index
      %c0_5 = arith.constant 0 : index
      %10 = vector.load %arg4[%c0_4, %c0_5] : memref<32x32xbf16, #tpu.memory_space<vmem>>, vector<32x32xbf16>
      %cst = arith.constant dense<0.000000e+00> : vector<16x32xf32>
      %11 = tpu.matmul %9, %10, %cst {dimension_numbers = #tpu.dot_dimension_numbers<[1], [0], [0], [1], [0, 0, 1, 1], [], []>} : vector<16x32xbf16>, vector<32x32xbf16>, vector<16x32xf32> -> vector<16x32xf32>
      %c0_6 = arith.constant 0 : index
      %c0_7 = arith.constant 0 : index
      %12 = vector.load %arg5[%c0_6, %c0_7] : memref<1x32xf32, #tpu.memory_space<vmem>>, vector<1x32xf32>
      %13 = vector.broadcast %12 : vector<1x32xf32> to vector<16x32xf32>
      %14 = arith.addf %11, %13 : vector<16x32xf32>
      %c0_8 = arith.constant 0 : index
      %c0_9 = arith.constant 0 : index
      %15 = vector.load %arg9[%c0_8, %c0_9] : memref<16x32xf32, #tpu.memory_space<vmem>>, vector<16x32xf32>
      tpu.vector_store %arg9[%c0_8, %c0_9], %14 {strides = array<i32>} : memref<16x32xf32, #tpu.memory_space<vmem>>, vector<16x32xf32>,
    } else {
    }
    %3 = arith.index_cast %arg0 : i32 to index
    %4 = arith.index_cast %arg1 : i32 to index
    %5 = memref.load %arg2[%3, %4] : memref<1x8xi32, #tpu.memory_space<smem>>
    %c0_i32_1 = arith.constant 0 : i32
    %6 = arith.cmpi ne, %5, %c0_i32_1 : i32
    %7 = arith.extui %6 : i1 to i32
    %c0_i32_2 = arith.constant 0 : i32
    %8 = arith.cmpi ne, %7, %c0_i32_2 : i32
    scf.if %8 {
      %9 = arith.index_cast %arg1 : i32 to index
      %c0 = arith.constant 0 : index
      %c0_3 = arith.constant 0 : index
      %10 = vector.load %arg6[%9, %c0, %c0_3] : memref<8x32x32xbf16, #tpu.memory_space<vmem>>, vector<1x32x32xbf16>
      %11 = vector.shape_cast %10 : vector<1x32x32xbf16> to vector<32x32xbf16>
      %c0_4 = arith.constant 0 : index
      %c0_5 = arith.constant 0 : index
      %12 = vector.load %arg3[%c0_4, %c0_5] : memref<16x32xbf16, #tpu.memory_space<vmem>>, vector<16x32xbf16>
      %cst = arith.constant dense<0.000000e+00> : vector<16x32xf32>
      %13 = tpu.matmul %12, %11, %cst {dimension_numbers = #tpu.dot_dimension_numbers<[1], [0], [0], [1], [0, 0, 1, 1], [], []>} : vector<16x32xbf16>, vector<32x32xbf16>, vector<16x32xf32> -> vector<16x32xf32>
      %c0_6 = arith.constant 0 : index
      %c0_7 = arith.constant 0 : index
      %14 = vector.load %arg9[%c0_6, %c0_7] : memref<16x32xf32, #tpu.memory_space<vmem>>, vector<16x32xf32>
      %15 = arith.index_cast %arg1 : i32 to index
      %c0_8 = arith.constant 0 : index
      %c0_9 = arith.constant 0 : index
      %16 = vector.load %arg7[%15, %c0_8, %c0_9] : memref<8x1x32xf32, #tpu.memory_space<vmem>>, vector<1x1x32xf32>
      %17 = vector.shape_cast %16 : vector<1x1x32xf32> to vector<1x32xf32>
      %18 = vector.broadcast %17 : vector<1x32xf32> to vector<16x32xf32>
      %19 = arith.addf %13, %18 : vector<16x32xf32>
      %20 = arith.index_cast %arg1 : i32 to index
      %c0_10 = arith.constant 0 : index
      %c0_11 = arith.constant 0 : index
      %21 = vector.load %arg8[%20, %c0_10, %c0_11] : memref<8x16x1xf32, #tpu.memory_space<vmem>>, vector<1x16x1xf32>
      %22 = vector.shape_cast %21 : vector<1x16x1xf32> to vector<16x1xf32>
      %23 = vector.broadcast %22 : vector<16x1xf32> to vector<16x32xf32>
      %24 = arith.mulf %19, %23 : vector<16x32xf32>
      %25 = arith.addf %14, %24 : vector<16x32xf32>
      %c0_12 = arith.constant 0 : index
      %c0_13 = arith.constant 0 : index
      %26 = vector.load %arg9[%c0_12, %c0_13] : memref<16x32xf32, #tpu.memory_space<vmem>>, vector<16x32xf32>
      tpu.vector_store %arg9[%c0_12, %c0_13], %25 {strides = array<i32>} : memref<16x32xf32, #tpu.memory_space<vmem>>, vector<16x32xf32>,
    } else {
    }
    return
  }
  func.func @transform_0(%arg0: i32, %arg1: i32, %arg2: memref<1x8xi32, #tpu.memory_space<smem>>) -> (i32, i32) {
    %c0_i32 = arith.constant 0 : i32
    %c0_i32_0 = arith.constant 0 : i32
    return %arg0, %c0_i32 : i32, i32
  }
  func.func @transform_1(%arg0: i32, %arg1: i32, %arg2: memref<1x8xi32, #tpu.memory_space<smem>>) -> (i32, i32) {
    %c0_i32 = arith.constant 0 : i32
    %c0_i32_0 = arith.constant 0 : i32
    %c0_i32_1 = arith.constant 0 : i32
    return %c0_i32, %c0_i32_0 : i32, i32
  }
  func.func @transform_2(%arg0: i32, %arg1: i32, %arg2: memref<1x8xi32, #tpu.memory_space<smem>>) -> (i32, i32) {
    %c0_i32 = arith.constant 0 : i32
    %c0_i32_0 = arith.constant 0 : i32
    %c0_i32_1 = arith.constant 0 : i32
    return %c0_i32, %c0_i32_0 : i32, i32
  }
  func.func @transform_3(%arg0: i32, %arg1: i32, %arg2: memref<1x8xi32, #tpu.memory_space<smem>>) -> (i32, i32, i32) {
    %c0_i32 = arith.constant 0 : i32
    %c0_i32_0 = arith.constant 0 : i32
    %c0_i32_1 = arith.constant 0 : i32
    %c0_i32_2 = arith.constant 0 : i32
    return %c0_i32, %c0_i32_0, %c0_i32_1 : i32, i32, i32
  }
  func.func @transform_4(%arg0: i32, %arg1: i32, %arg2: memref<1x8xi32, #tpu.memory_space<smem>>) -> (i32, i32, i32) {
    %c0_i32 = arith.constant 0 : i32
    %c0_i32_0 = arith.constant 0 : i32
    %c0_i32_1 = arith.constant 0 : i32
    %c0_i32_2 = arith.constant 0 : i32
    return %c0_i32, %c0_i32_0, %c0_i32_1 : i32, i32, i32
  }
  func.func @transform_5(%arg0: i32, %arg1: i32, %arg2: memref<1x8xi32, #tpu.memory_space<smem>>) -> (i32, i32, i32) {
    %c0_i32 = arith.constant 0 : i32
    %c0_i32_0 = arith.constant 0 : i32
    %c0_i32_1 = arith.constant 0 : i32
    return %c0_i32, %arg0, %c0_i32_0 : i32, i32, i32
  }
  func.func @transform_6(%arg0: i32, %arg1: i32, %arg2: memref<1x8xi32, #tpu.memory_space<smem>>) -> (i32, i32) {
    %c0_i32 = arith.constant 0 : i32
    %c0_i32_0 = arith.constant 0 : i32
    return %arg0, %c0_i32 : i32, i32
  }
}

</mosaic_0001>

<llo_original>
// kernel: moe_forward.1
$region0: #{moe_forward.1}
  #allocation0 [shape = 'u32[]', space=smem, size = 0x4, offset = 0x4, fixed_abs, tag = 'smem constant byte address 0x4 - core index']
  #allocation1 [shape = 'u32[144,128]{1,0:T(1,128)}', space=vmem, size = 0x12000, scoped, tag = 'internal scratch']
  #allocation2 [shape = 's32[1]{0}', space=sflag, size = 0x4, scoped, tag = 'scoped memory for moe_forward.1']
  #allocation3 [shape = 'u8[512]{0}', space=smem, size = 0x200, scoped, tag = 'prefetched SMEM operand 0']
  %s0 = inlined_call_operand.vmem [shape: s32[1,8], index: 0, kind: input, shape index: {}]
  %s1 = inlined_call_operand.vmem [shape: bf16[16,32], index: 1, kind: input, shape index: {}]
  %s2 = inlined_call_operand.vmem [shape: bf16[32,32], index: 2, kind: input, shape index: {}]
  %s3 = inlined_call_operand.vmem [shape: f32[1,32], index: 3, kind: input, shape index: {}]
  %s4 = inlined_call_operand.vmem [shape: bf16[8,32,32], index: 4, kind: input, shape index: {}]
  %s5 = inlined_call_operand.vmem [shape: f32[8,1,32], index: 5, kind: input, shape index: {}]
  %s6 = inlined_call_operand.vmem [shape: f32[8,16,1], index: 6, kind: input, shape index: {}]
  %s7 = inlined_call_operand.hbm [shape: f32[16,32], index: 7, kind: output, shape index: {}]
  %s8 = sld [smem:[#allocation0]]
  $region65: #{moe_forward.1} parent=0
    _
  %s10 = ssub.s32 1, %s8
  %s11 = scalar_select 0, %s10, %s8
  %s12 = sshll.u32 %s0, 4
  %s13 = int_to_ptr.vmem [resolvable:$true] %s12
  %15 = dma.vmem_to_smem %s13, 16, [#allocation3], [#allocation2]
  %16 = dma.done [#allocation2], 16
  %17 = sfence
  $region1: #{moe_forward.1} parent=0
    #allocation4 [shape = 'u8[8192]{0}', space=vmem, size = 0x2000, scoped, tag = 'output window, operand 0, single buffered']
    #allocation5 [shape = 's32[2]{0}', space=sflag, size = 0x8, scoped, tag = 'scoped memory for moe_forward.1']
    %18 = vsyncpa [#allocation5], 0
    loop: start=0, step=1, limit=10
    $region2: #{moe_forward.1} parent=1 // loop_pre_header
      _
    $region3: #{moe_forward.1} parent=1 // loop_header
      %s20 = sphi 0, %s24
      %p21 = scmp.ge.s32.totalorder %s20, 10
      %s27 = sphi 0, %s39
      %s28 = sphi 0, %s35
      %s29 = sphi 0, %s27
      %s30 = sphi 0, %s28
      %s31 = sphi 0, %s29
      %s32 = sphi 0, %s30
      %s42 = sphi 0, %s44
      %s45 = sphi 0, %s42
      %s46 = sphi 0, %s45
      %s62 = sphi 0, %s46
      %s66 = sphi 0, %s66
      %s68 = sphi 0, %s66
      %s69 = sphi 0, %s68
      %s83 = sphi 0, %s69
      %s87 = sphi 0, %s87
      %s89 = sphi 0, %s87
      %s90 = sphi 0, %s89
      %s104 = sphi 0, %s90
      %s108 = sphi 0, %s108
      %s110 = sphi 0, %s108
      %s111 = sphi 0, %s110
      %s125 = sphi 0, %s111
      %s129 = sphi 0, %s129
      %s131 = sphi 0, %s129
      %s132 = sphi 0, %s131
      %s146 = sphi 0, %s132
      %s152 = sphi 0, %s154
      %s155 = sphi 0, %s152
      %s156 = sphi 0, %s155
      %s172 = sphi 0, %s156
      %s178 = sphi 0, %s180
      %s181 = sphi 0, %s178
      %s182 = sphi 0, %s181
      %s198 = sphi 0, %s182
    $region4: #{moe_forward.1} parent=1 // loop_header_branch
      %23 = sbr.rel (%p21) target = $region8
    $region5: #{moe_forward.1} parent=1 // loop_body
      %s25 = ssub.s32 %s20, 1
      %s26 = ssub.s32 %s20, 2
      %s33 = sadd.s32 1, %s28
      %p34 = scmp.ge.s32.totalorder %s33, 8
      %s35 = scalar_select %p34, 0, %s33
      %s36 = sadd.s32 1, %s27
      %s37 = scalar_select %p34, %s36, %s27
      %p38 = scmp.ge.s32.totalorder %s37, 1
      %s39 = scalar_select %p38, 0, %s37
      %s40 = ssub.s32 %s27, %s39
      %p41 = scmp.eq.s32.totalorder %s40, 0
      %s43 = sadd.s32 %s42, 1
      %s44 = scalar_select %p41, %s42, %s43
      %p47 = pneg %p41
      %p48 = scmp.eq.s32.totalorder %s20, 7
      %p49 = por %p47, %p48
      %p50 = scmp.ne.s32.totalorder %s42, %s45
      %p51 = scmp.eq.s32.totalorder %s20, 0
      %p52 = por %p50, %p51
      %p53 = scmp.ne.s32.totalorder %s42, %s45
      %p54 = scmp.eq.s32.totalorder %s25, 7
      %p55 = por %p53, %p54
      %p56 = scmp.ne.s32.totalorder %s45, %s46
      %p57 = scmp.eq.s32.totalorder %s25, 0
      %p58 = por %p56, %p57
      %p59 = scmp.ne.s32.totalorder %s45, %s46
      %p60 = scmp.eq.s32.totalorder %s26, 7
      %p61 = por %p59, %p60
      %p63 = scmp.ne.s32.totalorder %s46, %s62
      %p64 = scmp.eq.s32.totalorder %s26, 0
      %p65 = por %p63, %p64
      %s67 = sadd.s32 %s66, 1
      %p70 = scmp.eq.s32.totalorder %s20, 7
      %p71 = scmp.ne.s32.totalorder %s66, %s68
      %p72 = scmp.eq.s32.totalorder %s20, 0
      %p73 = por %p71, %p72
      %p74 = scmp.ne.s32.totalorder %s66, %s68
      %p75 = scmp.eq.s32.totalorder %s25, 7
      %p76 = por %p74, %p75
      %p77 = scmp.ne.s32.totalorder %s68, %s69
      %p78 = scmp.eq.s32.totalorder %s25, 0
      %p79 = por %p77, %p78
      %p80 = scmp.ne.s32.totalorder %s68, %s69
      %p81 = scmp.eq.s32.totalorder %s26, 7
      %p82 = por %p80, %p81
      %p84 = scmp.ne.s32.totalorder %s69, %s83
      %p85 = scmp.eq.s32.totalorder %s26, 0
      %p86 = por %p84, %p85
      %s88 = sadd.s32 %s87, 1
      %p91 = scmp.eq.s32.totalorder %s20, 7
      %p92 = scmp.ne.s32.totalorder %s87, %s89
      %p93 = scmp.eq.s32.totalorder %s20, 0
      %p94 = por %p92, %p93
      %p95 = scmp.ne.s32.totalorder %s87, %s89
      %p96 = scmp.eq.s32.totalorder %s25, 7
      %p97 = por %p95, %p96
      %p98 = scmp.ne.s32.totalorder %s89, %s90
      %p99 = scmp.eq.s32.totalorder %s25, 0
      %p100 = por %p98, %p99
      %p101 = scmp.ne.s32.totalorder %s89, %s90
      %p102 = scmp.eq.s32.totalorder %s26, 7
      %p103 = por %p101, %p102
      %p105 = scmp.ne.s32.totalorder %s90, %s104
      %p106 = scmp.eq.s32.totalorder %s26, 0
      %p107 = por %p105, %p106
      %s109 = sadd.s32 %s108, 1
      %p112 = scmp.eq.s32.totalorder %s20, 7
      %p113 = scmp.ne.s32.totalorder %s108, %s110
      %p114 = scmp.eq.s32.totalorder %s20, 0
      %p115 = por %p113, %p114
      %p116 = scmp.ne.s32.totalorder %s108, %s110
      %p117 = scmp.eq.s32.totalorder %s25, 7
      %p118 = por %p116, %p117
      %p119 = scmp.ne.s32.totalorder %s110, %s111
      %p120 = scmp.eq.s32.totalorder %s25, 0
      %p121 = por %p119, %p120
      %p122 = scmp.ne.s32.totalorder %s110, %s111
      %p123 = scmp.eq.s32.totalorder %s26, 7
      %p124 = por %p122, %p123
      %p126 = scmp.ne.s32.totalorder %s111, %s125
      %p127 = scmp.eq.s32.totalorder %s26, 0
      %p128 = por %p126, %p127
      %s130 = sadd.s32 %s129, 1
      %p133 = scmp.eq.s32.totalorder %s20, 7
      %p134 = scmp.ne.s32.totalorder %s129, %s131
      %p135 = scmp.eq.s32.totalorder %s20, 0
      %p136 = por %p134, %p135
      %p137 = scmp.ne.s32.totalorder %s129, %s131
      %p138 = scmp.eq.s32.totalorder %s25, 7
      %p139 = por %p137, %p138
      %p140 = scmp.ne.s32.totalorder %s131, %s132
      %p141 = scmp.eq.s32.totalorder %s25, 0
      %p142 = por %p140, %p141
      %p143 = scmp.ne.s32.totalorder %s131, %s132
      %p144 = scmp.eq.s32.totalorder %s26, 7
      %p145 = por %p143, %p144
      %p147 = scmp.ne.s32.totalorder %s132, %s146
      %p148 = scmp.eq.s32.totalorder %s26, 0
      %p149 = por %p147, %p148
      %s150 = ssub.s32 %s27, %s39
      %p151 = scmp.eq.s32.totalorder %s150, 0
      %s153 = sadd.s32 %s152, 1
      %s154 = scalar_select %p151, %s152, %s153
      %p157 = pneg %p151
      %p158 = scmp.eq.s32.totalorder %s20, 7
      %p159 = por %p157, %p158
      %p160 = scmp.ne.s32.totalorder %s152, %s155
      %p161 = scmp.eq.s32.totalorder %s20, 0
      %p162 = por %p160, %p161
      %p163 = scmp.ne.s32.totalorder %s152, %s155
      %p164 = scmp.eq.s32.totalorder %s25, 7
      %p165 = por %p163, %p164
      %p166 = scmp.ne.s32.totalorder %s155, %s156
      %p167 = scmp.eq.s32.totalorder %s25, 0
      %p168 = por %p166, %p167
      %p169 = scmp.ne.s32.totalorder %s155, %s156
      %p170 = scmp.eq.s32.totalorder %s26, 7
      %p171 = por %p169, %p170
      %p173 = scmp.ne.s32.totalorder %s156, %s172
      %p174 = scmp.eq.s32.totalorder %s26, 0
      %p175 = por %p173, %p174
      %s176 = ssub.s32 %s27, %s39
      %p177 = scmp.eq.s32.totalorder %s176, 0
      %s179 = sadd.s32 %s178, 1
      %s180 = scalar_select %p177, %s178, %s179
      %p183 = pneg %p177
      %p184 = scmp.eq.s32.totalorder %s20, 7
      %p185 = por %p183, %p184
      %p186 = scmp.ne.s32.totalorder %s178, %s181
      %p187 = scmp.eq.s32.totalorder %s20, 0
      %p188 = por %p186, %p187
      %p189 = scmp.ne.s32.totalorder %s178, %s181
      %p190 = scmp.eq.s32.totalorder %s25, 7
      %p191 = por %p189, %p190
      %p192 = scmp.ne.s32.totalorder %s181, %s182
      %p193 = scmp.eq.s32.totalorder %s25, 0
      %p194 = por %p192, %p193
      %p195 = scmp.ne.s32.totalorder %s181, %s182
      %p196 = scmp.eq.s32.totalorder %s26, 7
      %p197 = por %p195, %p196
      %p199 = scmp.ne.s32.totalorder %s182, %s198
      %p200 = scmp.eq.s32.totalorder %s26, 0
      %p201 = por %p199, %p200
      %p202 = scmp.le.s32.totalorder 1, %s20
      %p203 = scmp.lt.s32.totalorder %s20, 9
      %p204 = pnand %p202, %p203
      %p205 = pneg %p204
      // Predicated region
      $region9: #{moe_forward.1} parent=5 // pred_check
        _
      $region10: #{moe_forward.1} parent=5 // pred_check_branch
        %207 = sbr.rel (%p204) target = $region12
      $region11: #{moe_forward.1} parent=5 // pred_region
        %s208 = ssub.s32 %s20, 1
        // Predicated region
        $region13: #{moe_forward.1} parent=11 // pred_check
          %p209 = pneg %p58
        $region14: #{moe_forward.1} parent=11 // pred_check_branch
          %211 = sbr.rel (%p209) target = $region16
        $region15: #{moe_forward.1} parent=11 // pred_region
          %s212 = smul.u32 2, %s29
          %p213 = scmp.lt.s32.totalorder %s212, 1
          %s214 = scalar_select %p213, %s212, 1
          %s215 = smul.addr %s214, 4
          %s216 = scalar_lea.vmem %s1, %s215
          %s217 = smul.u32 2, %s29
        $region16: #{moe_forward.1} parent=11 // pred_fallthru
          _
        // Predicated region
        $region17: #{moe_forward.1} parent=11 // pred_check
          %p218 = pneg %p79
        $region18: #{moe_forward.1} parent=11 // pred_check_branch
          %220 = sbr.rel (%p218) target = $region20
        $region19: #{moe_forward.1} parent=11 // pred_region
          _
        $region20: #{moe_forward.1} parent=11 // pred_fallthru
          _
        // Predicated region
        $region21: #{moe_forward.1} parent=11 // pred_check
          %p221 = pneg %p100
        $region22: #{moe_forward.1} parent=11 // pred_check_branch
          %223 = sbr.rel (%p221) target = $region24
        $region23: #{moe_forward.1} parent=11 // pred_region
          _
        $region24: #{moe_forward.1} parent=11 // pred_fallthru
          _
        // Predicated region
        $region25: #{moe_forward.1} parent=11 // pred_check
          %p224 = pneg %p121
        $region26: #{moe_forward.1} parent=11 // pred_check_branch
          %226 = sbr.rel (%p224) target = $region28
        $region27: #{moe_forward.1} parent=11 // pred_region
          _
        $region28: #{moe_forward.1} parent=11 // pred_fallthru
          _
        // Predicated region
        $region29: #{moe_forward.1} parent=11 // pred_check
          %p227 = pneg %p142
        $region30: #{moe_forward.1} parent=11 // pred_check_branch
          %229 = sbr.rel (%p227) target = $region32
        $region31: #{moe_forward.1} parent=11 // pred_region
          _
        $region32: #{moe_forward.1} parent=11 // pred_fallthru
          _
        // Predicated region
        $region33: #{moe_forward.1} parent=11 // pred_check
          %p230 = pneg %p168
        $region34: #{moe_forward.1} parent=11 // pred_check_branch
          %232 = sbr.rel (%p230) target = $region36
        $region35: #{moe_forward.1} parent=11 // pred_region
          %s233 = smul.u32 2, %s29
          %p234 = scmp.lt.s32.totalorder %s233, 1
          %s235 = scalar_select %p234, %s233, 1
          %s236 = smul.addr %s235, 8
          %s237 = scalar_lea.vmem %s6, %s236
          %s238 = smul.u32 2, %s29
        $region36: #{moe_forward.1} parent=11 // pred_fallthru
          _
      $region12: #{moe_forward.1} parent=5 // pred_fallthru
        _
      %p239 = scmp.lt.s32.totalorder %s20, 8
      // Predicated region
      $region37: #{moe_forward.1} parent=5 // pred_check
        %p240 = pneg %p239
      $region38: #{moe_forward.1} parent=5 // pred_check_branch
        %242 = sbr.rel (%p240) target = $region40
      $region39: #{moe_forward.1} parent=5 // pred_region
        _
      $region40: #{moe_forward.1} parent=5 // pred_fallthru
        _
      %p243 = scmp.le.s32.totalorder 1, %s20
      %p244 = scmp.lt.s32.totalorder %s20, 9
      %p245 = pnand %p243, %p244
      %p246 = pneg %p245
      // Predicated region
      $region41: #{moe_forward.1} parent=5 // pred_check
        _
      $region42: #{moe_forward.1} parent=5 // pred_check_branch
        %248 = sbr.rel (%p245) target = $region44
      $region43: #{moe_forward.1} parent=5 // pred_region
        %s249 = ssub.s32 %s20, 1
        %s250 = smul.u32 2, %s29
        %p251 = scmp.lt.s32.totalorder %s250, 1
        %s252 = scalar_select %p251, %s250, 1
        %s253 = smul.addr %s252, 4
        %s254 = scalar_lea.vmem %s1, %s253
        %p255 = pneg %p58
        %p256 = pneg %p55
        %p257 = pneg %p79
        %p258 = pneg %p76
        %p259 = pneg %p100
        %p260 = pneg %p97
        %p261 = pneg %p121
        %p262 = pneg %p118
        %p263 = pneg %p142
        %p264 = pneg %p139
        %s265 = smul.u32 2, %s29
        %p266 = scmp.lt.s32.totalorder %s265, 1
        %s267 = scalar_select %p266, %s265, 1
        %s268 = smul.addr %s267, 8
        %s269 = scalar_lea.vmem %s6, %s268
        %p270 = pneg %p168
        %p271 = pneg %p165
        %p272 = pneg %p194
        %p273 = pneg %p191
        %s274 = smul.u32 2, %s29
        %p275 = scmp.lt.s32.totalorder %s274, 1
        %s276 = scalar_select %p275, %s274, 1
        %s277 = smul.addr %s276, 4
        %s278 = scalar_lea.vmem %s1, %s277
        %s279 = smul.u32 2, %s29
        %s280 = smul.u32 2, %s29
        %p281 = scmp.lt.s32.totalorder %s280, 1
        %s282 = scalar_select %p281, %s280, 1
        %s283 = smul.addr %s282, 8
        %s284 = scalar_lea.vmem %s6, %s283
        %s285 = smul.u32 2, %s29
        %s286 = smul.u32 2, %s29
        %p288 = scmp.eq.s32.totalorder %s30, 0
        // Predicated region
        $region45: #{moe_forward.1} parent=43 // pred_check
          %p289 = pneg %p288
        $region46: #{moe_forward.1} parent=43 // pred_check_branch
          %291 = sbr.rel (%p289) target = $region48
        $region47: #{moe_forward.1} parent=43 // pred_region
          %v292 = vld [vmem:[%s278] sm:$0xf]
          %v293 = vld [vmem:[%s278 + $0x4] sm:$0xf]
          %v294 = vld [vmem:[%s2] sm:$0xf]
          %v295 = vld [vmem:[%s2 + $0x4] sm:$0xf]
          %v296 = vld [vmem:[%s2 + $0x8] sm:$0xf]
          %v297 = vld [vmem:[%s2 + $0xc] sm:$0xf]
          %v298 = vld [vmem:[%s3] sm:$0x1]
          %v300 = vlaneseq
          %v301 = vshrl.u32 %v300, 7
          %v302 = vsub.s32 0, %v301
          %v303 = vrot.slane %v298, %v302
          %v307 = vunpack.c.l.b16 %v292
          %v308 = vunpack.c.l.b16 %v293
          %v309 = vpack.c.b16 %v308, %v307
          %v314 = vunpack.c.l.b16 %v294
          %v315 = vunpack.c.l.b16 %v295
          %v316 = vunpack.c.l.b16 %v296
          %v317 = vunpack.c.l.b16 %v297
          %v318 = vpack.c.b16 %v315, %v314
          %v319 = vpack.c.b16 %v317, %v316
          %vm322 = vcmask 261120
          %v324 = vsel %vm322, %v309, 0
          %326 = vmatprep.subr.bf16.mxu0 0
          %327 = vmatpush1.bf16.msra.mxu0 0
          %328 = vmatprep.subr.bf16.mxu0 0
          %329 = vmatpush1.bf16.msra.mxu0 0
          %330 = vmatprep.subr.bf16.mxu0 0
          %331 = vmatpush1.bf16.msra.mxu0 0
          %332 = vmatprep.subr.bf16.mxu0 0
          %333 = vmatpush1.bf16.msra.mxu0 0
          %334 = vmatprep.subr.bf16.mxu0 0
          %335 = vmatpush1.bf16.msra.mxu0 0
          %336 = vmatprep.subr.bf16.mxu0 0
          %337 = vmatpush1.bf16.msra.mxu0 0
          %338 = vmatprep.subr.bf16.mxu0 0
          %339 = vmatpush1.bf16.msra.mxu0 %v319
          %340 = vmatprep.subr.bf16.mxu0 0
          %341 = vmatpush1.bf16.msra.mxu0 %v318
          %342 = vmatprep.subr.bf16.mxu0 0
          %343 = vmatpush2.bf16.msra.mxu0 0
          %344 = vmatprep.subr.bf16.mxu0 0
          %345 = vmatpush2.bf16.msra.mxu0 0
          %346 = vmatprep.subr.bf16.mxu0 0
          %347 = vmatpush2.bf16.msra.mxu0 0
          %348 = vmatprep.subr.bf16.mxu0 0
          %349 = vmatpush2.bf16.msra.mxu0 0
          %350 = vmatprep.subr.bf16.mxu0 0
          %351 = vmatpush2.bf16.msra.mxu0 0
          %352 = vmatprep.subr.bf16.mxu0 0
          %353 = vmatpush2.bf16.msra.mxu0 0
          %354 = vmatprep.subr.bf16.mxu0 0
          %355 = vmatpush2.bf16.msra.mxu0 0
          %356 = vmatprep.subr.bf16.mxu0 0
          %357 = vmatpush2.bf16.msra.mxu0 0
          %358 = vmatprep.mubr.bf16.mxu0 0
          %359 = vmatmul.mubr.bf16.gmra.mxu0 %v324
          %v360 = vpop.f32.mrf.mxu0
          %v361 = vadd.f32 %v303, %v360
          %v362 = vpop.f32.mrf.mxu0
          %v363 = vpop.f32.mrf.mxu0
          %v364 = vadd.f32 %v303, %v363
          %v365 = vpop.f32.mrf.mxu0
          %366 = vdwg.mxu0
          %367 = vst.msk [vmem:[#allocation4] sm:$0xff] %vm322, %v361
          %368 = vst.msk [vmem:[#allocation4 + $0x8] sm:$0xff] %vm322, %v364
        $region48: #{moe_forward.1} parent=43 // pred_fallthru
          _
        %s369 = sshra.s32 %s30, 7
        %s370 = sand.u32 %s30, 127
        %s371 = sadd.s32 %s369, %s29
        %s372 = smul.u32 %s371, 128
        %s373 = sshra.s32 %s30, 7
        %s374 = sand.u32 %s30, 127
        %s375 = sadd.s32 %s372, %s374
        %s376 = sld [smem:[#allocation3 + %s375]]
        %p377 = scmp.ne.s32.totalorder %s376, 0
        // Predicated region
        $region49: #{moe_forward.1} parent=43 // pred_check
          %p378 = pneg %p377
        $region50: #{moe_forward.1} parent=43 // pred_check_branch
          %380 = sbr.rel (%p378) target = $region52
        $region51: #{moe_forward.1} parent=43 // pred_region
          %s381 = smul.u32 %s30, 4
          %s382 = smul.addr %s381, 4
          %s383 = scalar_lea.vmem %s4, %s382
          %v384 = vld [vmem:[%s383] sm:$0xf]
          %v385 = vld [vmem:[%s383 + $0x4] sm:$0xf]
          %v386 = vld [vmem:[%s383 + $0x8] sm:$0xf]
          %v387 = vld [vmem:[%s383 + $0xc] sm:$0xf]
          %v388 = vld [vmem:[%s278] sm:$0xf]
          %v389 = vld [vmem:[%s278 + $0x4] sm:$0xf]
          %v390 = vld [vmem:[#allocation4] sm:$0xff]
          %v391 = vld [vmem:[#allocation4 + $0x8] sm:$0xff]
          %s392 = scalar_lea.vmem %s5, %s30
          %v393 = vld [vmem:[%s392] sm:$0x1]
          %v395 = vlaneseq
          %v396 = vshrl.u32 %v395, 7
          %v397 = vsub.s32 0, %v396
          %v398 = vrot.slane %v393, %v397
          %v402 = vunpack.c.l.b16 %v388
          %v403 = vunpack.c.l.b16 %v389
          %v404 = vpack.c.b16 %v403, %v402
          %v409 = vunpack.c.l.b16 %v384
          %v410 = vunpack.c.l.b16 %v385
          %v411 = vunpack.c.l.b16 %v386
          %v412 = vunpack.c.l.b16 %v387
          %v413 = vpack.c.b16 %v410, %v409
          %v414 = vpack.c.b16 %v412, %v411
          %vm417 = vcmask 261120
          %v419 = vsel %vm417, %v404, 0
          %421 = vmatprep.subr.bf16.mxu0 0
          %422 = vmatpush1.bf16.msra.mxu0 0
          %423 = vmatprep.subr.bf16.mxu0 0
          %424 = vmatpush1.bf16.msra.mxu0 0
          %425 = vmatprep.subr.bf16.mxu0 0
          %426 = vmatpush1.bf16.msra.mxu0 0
          %427 = vmatprep.subr.bf16.mxu0 0
          %428 = vmatpush1.bf16.msra.mxu0 0
          %429 = vmatprep.subr.bf16.mxu0 0
          %430 = vmatpush1.bf16.msra.mxu0 0
          %431 = vmatprep.subr.bf16.mxu0 0
          %432 = vmatpush1.bf16.msra.mxu0 0
          %433 = vmatprep.subr.bf16.mxu0 0
          %434 = vmatpush1.bf16.msra.mxu0 %v414
          %435 = vmatprep.subr.bf16.mxu0 0
          %436 = vmatpush1.bf16.msra.mxu0 %v413
          %437 = vmatprep.subr.bf16.mxu0 0
          %438 = vmatpush2.bf16.msra.mxu0 0
          %439 = vmatprep.subr.bf16.mxu0 0
          %440 = vmatpush2.bf16.msra.mxu0 0
          %441 = vmatprep.subr.bf16.mxu0 0
          %442 = vmatpush2.bf16.msra.mxu0 0
          %443 = vmatprep.subr.bf16.mxu0 0
          %444 = vmatpush2.bf16.msra.mxu0 0
          %445 = vmatprep.subr.bf16.mxu0 0
          %446 = vmatpush2.bf16.msra.mxu0 0
          %447 = vmatprep.subr.bf16.mxu0 0
          %448 = vmatpush2.bf16.msra.mxu0 0
          %449 = vmatprep.subr.bf16.mxu0 0
          %450 = vmatpush2.bf16.msra.mxu0 0
          %451 = vmatprep.subr.bf16.mxu0 0
          %452 = vmatpush2.bf16.msra.mxu0 0
          %453 = vmatprep.mubr.bf16.mxu0 0
          %454 = vmatmul.mubr.bf16.gmra.mxu0 %v419
          %v455 = vpop.f32.mrf.mxu0
          %v456 = vadd.f32 %v398, %v455
          %v457 = vpop.f32.mrf.mxu0
          %v458 = vpop.f32.mrf.mxu0
          %v459 = vadd.f32 %v398, %v458
          %v460 = vpop.f32.mrf.mxu0
          %461 = vdwg.mxu0
          %s462 = smul.u32 %s30, 16
          %s463 = scalar_lea.vmem %s284, %s462
          %v464 = vld [vmem:[%s463] sm:$0xff]
          %v465 = vld [vmem:[%s463 + $0x8] sm:$0xff]
          %467 = vset.pattern.permute.xlu0 0
          %468 = vperm.xlu0 %467, %v464
          %v469 = vpop.permute.xlu0 %468
          %472 = vset.pattern.permute.xlu0 0
          %473 = vperm.xlu0 %472, %v465
          %v474 = vpop.permute.xlu0 %473
          %v476 = vmul.f32 %v456, %v469
          %v477 = vmul.f32 %v459, %v474
          %v478 = vadd.f32 %v390, %v476
          %v479 = vadd.f32 %v391, %v477
          %480 = vst.msk [vmem:[#allocation4] sm:$0xff] %vm417, %v478
          %481 = vst.msk [vmem:[#allocation4 + $0x8] sm:$0xff] %vm417, %v479
        $region52: #{moe_forward.1} parent=43 // pred_fallthru
          _
        // Predicated region
        $region53: #{moe_forward.1} parent=43 // pred_check
          %p482 = pneg %p191
        $region54: #{moe_forward.1} parent=43 // pred_check_branch
          %484 = sbr.rel (%p482) target = $region56
        $region55: #{moe_forward.1} parent=43 // pred_region
          %s485 = smul.u32 2, %s29
          %s487 = ssub.s32 256, 256
          %488 = vsyncadd [#allocation5], %s487
          %s489 = smul.addr %s485, 128
          %s490 = scalar_lea.hbm %s7, %s489
          %s491 = sshll.u32 [#allocation4], 4
          %s492 = int_to_ptr.vmem [resolvable:$true] %s491
          %497 = dma.vmem_to_hbm [thread:$0]  %s492, 256, %s490, [#allocation5], 128, 128, 8
        $region56: #{moe_forward.1} parent=43 // pred_fallthru
          _
        // Predicated region
        $region57: #{moe_forward.1} parent=43 // pred_check
          %p498 = pneg %p191
        $region58: #{moe_forward.1} parent=43 // pred_check_branch
          %500 = sbr.rel (%p498) target = $region60
        $region59: #{moe_forward.1} parent=43 // pred_region
          %501 = dma.done [#allocation5], 256
        $region60: #{moe_forward.1} parent=43 // pred_fallthru
          _
      $region44: #{moe_forward.1} parent=5 // pred_fallthru
        _
      %p502 = scmp.le.s32.totalorder 2, %s20
      // Predicated region
      $region61: #{moe_forward.1} parent=5 // pred_check
        %p503 = pneg %p502
      $region62: #{moe_forward.1} parent=5 // pred_check_branch
        %505 = sbr.rel (%p503) target = $region64
      $region63: #{moe_forward.1} parent=5 // pred_region
        %s506 = ssub.s32 %s20, 2
      $region64: #{moe_forward.1} parent=5 // pred_fallthru
        _
    $region6: #{moe_forward.1} parent=1 // loop_footer
      %s24 = sadd.s32 1, %s20
    $region7: #{moe_forward.1} parent=1 // loop_footer_branch
      %19 = sbr.rel target = $region3
    $region8: #{moe_forward.1} parent=1 // loop_exit
      _
    %507 = vsyncpa [#allocation5], 1
    %s508 = scalar_lea.sflag [#allocation5], 1
    %509 = vsyncpa %s508, 1

// kernel: moe_forward.1
$region0: #{moe_forward.1}
  #allocation0 [shape = 'u32[]', space=smem, size = 0x4, offset = 0x4, fixed_abs, tag = 'smem constant byte address 0x4 - core index']
  #allocation1 [shape = 'u32[144,128]{1,0:T(1,128)}', space=vmem, size = 0x12000, scoped, tag = 'internal scratch']
  #allocation2 [shape = 's32[1]{0}', space=sflag, size = 0x4, scoped, tag = 'scoped memory for moe_forward.1']
  #allocation3 [shape = 'u8[512]{0}', space=smem, size = 0x200, scoped, tag = 'prefetched SMEM operand 0']
  %s0 = inlined_call_operand.vmem [shape: s32[1,8], index: 0, kind: input, shape index: {}]
  %s1 = inlined_call_operand.vmem [shape: bf16[16,32], index: 1, kind: input, shape index: {}]
  %s2 = inlined_call_operand.vmem [shape: bf16[32,32], index: 2, kind: input, shape index: {}]
  %s3 = inlined_call_operand.vmem [shape: f32[1,32], index: 3, kind: input, shape index: {}]
  %s4 = inlined_call_operand.vmem [shape: bf16[8,32,32], index: 4, kind: input, shape index: {}]
  %s5 = inlined_call_operand.vmem [shape: f32[8,1,32], index: 5, kind: input, shape index: {}]
  %s6 = inlined_call_operand.vmem [shape: f32[8,16,1], index: 6, kind: input, shape index: {}]
  %s7 = inlined_call_operand.hbm [shape: f32[16,32], index: 7, kind: output, shape index: {}]
  %s8 = sld [smem:[#allocation0]]
  $region65: #{moe_forward.1} parent=0
    _
  %s10 = ssub.s32 1, %s8
  %s11 = scalar_select 0, %s10, %s8
  %s12 = sshll.u32 %s0, 4
  %s13 = int_to_ptr.vmem [resolvable:$true] %s12
  %15 = dma.vmem_to_smem %s13, 16, [#allocation3], [#allocation2]
  %16 = dma.done [#allocation2], 16
  %17 = sfence
  $region1: #{moe_forward.1} parent=0
    #allocation4 [shape = 'u8[8192]{0}', space=vmem, size = 0x2000, scoped, tag = 'output window, operand 0, single buffered']
    #allocation5 [shape = 's32[2]{0}', space=sflag, size = 0x8, scoped, tag = 'scoped memory for moe_forward.1']
    %18 = vsyncpa [#allocation5], 0
    loop: start=0, step=1, limit=10
    $region2: #{moe_forward.1} parent=1 // loop_pre_header
      _
    $region3: #{moe_forward.1} parent=1 // loop_header
      %s20 = sphi 0, %s24
      %p21 = scmp.ge.s32.totalorder %s20, 10
      %s27 = sphi 0, %s39
      %s28 = sphi 0, %s35
      %s29 = sphi 0, %s27
      %s30 = sphi 0, %s28
      %s31 = sphi 0, %s29
      %s32 = sphi 0, %s30
      %s42 = sphi 0, %s44
      %s45 = sphi 0, %s42
      %s46 = sphi 0, %s45
      %s62 = sphi 0, %s46
      %s66 = sphi 0, %s66
      %s68 = sphi 0, %s66
      %s69 = sphi 0, %s68
      %s83 = sphi 0, %s69
      %s87 = sphi 0, %s87
      %s89 = sphi 0, %s87
      %s90 = sphi 0, %s89
      %s104 = sphi 0, %s90
      %s108 = sphi 0, %s108
      %s110 = sphi 0, %s108
      %s111 = sphi 0, %s110
      %s125 = sphi 0, %s111
      %s129 = sphi 0, %s129
      %s131 = sphi 0, %s129
      %s132 = sphi 0, %s131
      %s146 = sphi 0, %s132
      %s152 = sphi 0, %s154
      %s155 = sphi 0, %s152
      %s156 = sphi 0, %s155
      %s172 = sphi 0, %s156
      %s178 = sphi 0, %s180
      %s181 = sphi 0, %s178
      %s182 = sphi 0, %s181
      %s198 = sphi 0, %s182
    $region4: #{moe_forward.1} parent=1 // loop_header_branch
      %23 = sbr.rel (%p21) target = $region8
    $region5: #{moe_forward.1} parent=1 // loop_body
      %s25 = ssub.s32 %s20, 1
      %s26 = ssub.s32 %s20, 2
      %s33 = sadd.s32 1, %s28
      %p34 = scmp.ge.s32.totalorder %s33, 8
      %s35 = scalar_select %p34, 0, %s33
      %s36 = sadd.s32 1, %s27
      %s37 = scalar_select %p34, %s36, %s27
      %p38 = scmp.ge.s32.totalorder %s37, 1
      %s39 = scalar_select %p38, 0, %s37
      %s40 = ssub.s32 %s27, %s39
      %p41 = scmp.eq.s32.totalorder %s40, 0
      %s43 = sadd.s32 %s42, 1
      %s44 = scalar_select %p41, %s42, %s43
      %p47 = pneg %p41
      %p48 = scmp.eq.s32.totalorder %s20, 7
      %p49 = por %p47, %p48
      %p50 = scmp.ne.s32.totalorder %s42, %s45
      %p51 = scmp.eq.s32.totalorder %s20, 0
      %p52 = por %p50, %p51
      %p53 = scmp.ne.s32.totalorder %s42, %s45
      %p54 = scmp.eq.s32.totalorder %s25, 7
      %p55 = por %p53, %p54
      %p56 = scmp.ne.s32.totalorder %s45, %s46
      %p57 = scmp.eq.s32.totalorder %s25, 0
      %p58 = por %p56, %p57
      %p59 = scmp.ne.s32.totalorder %s45, %s46
      %p60 = scmp.eq.s32.totalorder %s26, 7
      %p61 = por %p59, %p60
      %p63 = scmp.ne.s32.totalorder %s46, %s62
      %p64 = scmp.eq.s32.totalorder %s26, 0
      %p65 = por %p63, %p64
      %s67 = sadd.s32 %s66, 1
      %p70 = scmp.eq.s32.totalorder %s20, 7
      %p71 = scmp.ne.s32.totalorder %s66, %s68
      %p72 = scmp.eq.s32.totalorder %s20, 0
      %p73 = por %p71, %p72
      %p74 = scmp.ne.s32.totalorder %s66, %s68
      %p75 = scmp.eq.s32.totalorder %s25, 7
      %p76 = por %p74, %p75
      %p77 = scmp.ne.s32.totalorder %s68, %s69
      %p78 = scmp.eq.s32.totalorder %s25, 0
      %p79 = por %p77, %p78
      %p80 = scmp.ne.s32.totalorder %s68, %s69
      %p81 = scmp.eq.s32.totalorder %s26, 7
      %p82 = por %p80, %p81
      %p84 = scmp.ne.s32.totalorder %s69, %s83
      %p85 = scmp.eq.s32.totalorder %s26, 0
      %p86 = por %p84, %p85
      %s88 = sadd.s32 %s87, 1
      %p91 = scmp.eq.s32.totalorder %s20, 7
      %p92 = scmp.ne.s32.totalorder %s87, %s89
      %p93 = scmp.eq.s32.totalorder %s20, 0
      %p94 = por %p92, %p93
      %p95 = scmp.ne.s32.totalorder %s87, %s89
      %p96 = scmp.eq.s32.totalorder %s25, 7
      %p97 = por %p95, %p96
      %p98 = scmp.ne.s32.totalorder %s89, %s90
      %p99 = scmp.eq.s32.totalorder %s25, 0
      %p100 = por %p98, %p99
      %p101 = scmp.ne.s32.totalorder %s89, %s90
      %p102 = scmp.eq.s32.totalorder %s26, 7
      %p103 = por %p101, %p102
      %p105 = scmp.ne.s32.totalorder %s90, %s104
      %p106 = scmp.eq.s32.totalorder %s26, 0
      %p107 = por %p105, %p106
      %s109 = sadd.s32 %s108, 1
      %p112 = scmp.eq.s32.totalorder %s20, 7
      %p113 = scmp.ne.s32.totalorder %s108, %s110
      %p114 = scmp.eq.s32.totalorder %s20, 0
      %p115 = por %p113, %p114
      %p116 = scmp.ne.s32.totalorder %s108, %s110
      %p117 = scmp.eq.s32.totalorder %s25, 7
      %p118 = por %p116, %p117
      %p119 = scmp.ne.s32.totalorder %s110, %s111
      %p120 = scmp.eq.s32.totalorder %s25, 0
      %p121 = por %p119, %p120
      %p122 = scmp.ne.s32.totalorder %s110, %s111
      %p123 = scmp.eq.s32.totalorder %s26, 7
      %p124 = por %p122, %p123
      %p126 = scmp.ne.s32.totalorder %s111, %s125
      %p127 = scmp.eq.s32.totalorder %s26, 0
      %p128 = por %p126, %p127
      %s130 = sadd.s32 %s129, 1
      %p133 = scmp.eq.s32.totalorder %s20, 7
      %p134 = scmp.ne.s32.totalorder %s129, %s131
      %p135 = scmp.eq.s32.totalorder %s20, 0
      %p136 = por %p134, %p135
      %p137 = scmp.ne.s32.totalorder %s129, %s131
      %p138 = scmp.eq.s32.totalorder %s25, 7
      %p139 = por %p137, %p138
      %p140 = scmp.ne.s32.totalorder %s131, %s132
      %p141 = scmp.eq.s32.totalorder %s25, 0
      %p142 = por %p140, %p141
      %p143 = scmp.ne.s32.totalorder %s131, %s132
      %p144 = scmp.eq.s32.totalorder %s26, 7
      %p145 = por %p143, %p144
      %p147 = scmp.ne.s32.totalorder %s132, %s146
      %p148 = scmp.eq.s32.totalorder %s26, 0
      %p149 = por %p147, %p148
      %s150 = ssub.s32 %s27, %s39
      %p151 = scmp.eq.s32.totalorder %s150, 0
      %s153 = sadd.s32 %s152, 1
      %s154 = scalar_select %p151, %s152, %s153
      %p157 = pneg %p151
      %p158 = scmp.eq.s32.totalorder %s20, 7
      %p159 = por %p157, %p158
      %p160 = scmp.ne.s32.totalorder %s152, %s155
      %p161 = scmp.eq.s32.totalorder %s20, 0
      %p162 = por %p160, %p161
      %p163 = scmp.ne.s32.totalorder %s152, %s155
      %p164 = scmp.eq.s32.totalorder %s25, 7
      %p165 = por %p163, %p164
      %p166 = scmp.ne.s32.totalorder %s155, %s156
      %p167 = scmp.eq.s32.totalorder %s25, 0
      %p168 = por %p166, %p167
      %p169 = scmp.ne.s32.totalorder %s155, %s156
      %p170 = scmp.eq.s32.totalorder %s26, 7
      %p171 = por %p169, %p170
      %p173 = scmp.ne.s32.totalorder %s156, %s172
      %p174 = scmp.eq.s32.totalorder %s26, 0
      %p175 = por %p173, %p174
      %s176 = ssub.s32 %s27, %s39
      %p177 = scmp.eq.s32.totalorder %s176, 0
      %s179 = sadd.s32 %s178, 1
      %s180 = scalar_select %p177, %s178, %s179
      %p183 = pneg %p177
      %p184 = scmp.eq.s32.totalorder %s20, 7
      %p185 = por %p183, %p184
      %p186 = scmp.ne.s32.totalorder %s178, %s181
      %p187 = scmp.eq.s32.totalorder %s20, 0
      %p188 = por %p186, %p187
      %p189 = scmp.ne.s32.totalorder %s178, %s181
      %p190 = scmp.eq.s32.totalorder %s25, 7
      %p191 = por %p189, %p190
      %p192 = scmp.ne.s32.totalorder %s181, %s182
      %p193 = scmp.eq.s32.totalorder %s25, 0
      %p194 = por %p192, %p193
      %p195 = scmp.ne.s32.totalorder %s181, %s182
      %p196 = scmp.eq.s32.totalorder %s26, 7
      %p197 = por %p195, %p196
      %p199 = scmp.ne.s32.totalorder %s182, %s198
      %p200 = scmp.eq.s32.totalorder %s26, 0
      %p201 = por %p199, %p200
      %p202 = scmp.le.s32.totalorder 1, %s20
      %p203 = scmp.lt.s32.totalorder %s20, 9
      %p204 = pnand %p202, %p203
      %p205 = pneg %p204
      // Predicated region
      $region9: #{moe_forward.1} parent=5 // pred_check
        _
      $region10: #{moe_forward.1} parent=5 // pred_check_branch
        %207 = sbr.rel (%p204) target = $region12
      $region11: #{moe_forward.1} parent=5 // pred_region
        %s208 = ssub.s32 %s20, 1
        // Predicated region
        $region13: #{moe_forward.1} parent=11 // pred_check
          %p209 = pneg %p58
        $region14: #{moe_forward.1} parent=11 // pred_check_branch
          %211 = sbr.rel (%p209) target = $region16
        $region15: #{moe_forward.1} parent=11 // pred_region
          %s212 = smul.u32 2, %s29
          %p213 = scmp.lt.s32.totalorder %s212, 1
          %s214 = scalar_select %p213, %s212, 1
          %s215 = smul.addr %s214, 4
          %s216 = scalar_lea.vmem %s1, %s215
          %s217 = smul.u32 2, %s29
        $region16: #{moe_forward.1} parent=11 // pred_fallthru
          _
        // Predicated region
        $region17: #{moe_forward.1} parent=11 // pred_check
          %p218 = pneg %p79
        $region18: #{moe_forward.1} parent=11 // pred_check_branch
          %220 = sbr.rel (%p218) target = $region20
        $region19: #{moe_forward.1} parent=11 // pred_region
          _
        $region20: #{moe_forward.1} parent=11 // pred_fallthru
          _
        // Predicated region
        $region21: #{moe_forward.1} parent=11 // pred_check
          %p221 = pneg %p100
        $region22: #{moe_forward.1} parent=11 // pred_check_branch
          %223 = sbr.rel (%p221) target = $region24
        $region23: #{moe_forward.1} parent=11 // pred_region
          _
        $region24: #{moe_forward.1} parent=11 // pred_fallthru
          _
        // Predicated region
        $region25: #{moe_forward.1} parent=11 // pred_check
          %p224 = pneg %p121
        $region26: #{moe_forward.1} parent=11 // pred_check_branch
          %226 = sbr.rel (%p224) target = $region28
        $region27: #{moe_forward.1} parent=11 // pred_region
          _
        $region28: #{moe_forward.1} parent=11 // pred_fallthru
          _
        // Predicated region
        $region29: #{moe_forward.1} parent=11 // pred_check
          %p227 = pneg %p142
        $region30: #{moe_forward.1} parent=11 // pred_check_branch
          %229 = sbr.rel (%p227) target = $region32
        $region31: #{moe_forward.1} parent=11 // pred_region
          _
        $region32: #{moe_forward.1} parent=11 // pred_fallthru
          _
        // Predicated region
        $region33: #{moe_forward.1} parent=11 // pred_check
          %p230 = pneg %p168
        $region34: #{moe_forward.1} parent=11 // pred_check_branch
          %232 = sbr.rel (%p230) target = $region36
        $region35: #{moe_forward.1} parent=11 // pred_region
          %s233 = smul.u32 2, %s29
          %p234 = scmp.lt.s32.totalorder %s233, 1
          %s235 = scalar_select %p234, %s233, 1
          %s236 = smul.addr %s235, 8
          %s237 = scalar_lea.vmem %s6, %s236
          %s238 = smul.u32 2, %s29
        $region36: #{moe_forward.1} parent=11 // pred_fallthru
          _
      $region12: #{moe_forward.1} parent=5 // pred_fallthru
        _
      %p239 = scmp.lt.s32.totalorder %s20, 8
      // Predicated region
      $region37: #{moe_forward.1} parent=5 // pred_check
        %p240 = pneg %p239
      $region38: #{moe_forward.1} parent=5 // pred_check_branch
        %242 = sbr.rel (%p240) target = $region40
      $region39: #{moe_forward.1} parent=5 // pred_region
        _
      $region40: #{moe_forward.1} parent=5 // pred_fallthru
        _
      %p243 = scmp.le.s32.totalorder 1, %s20
      %p244 = scmp.lt.s32.totalorder %s20, 9
      %p245 = pnand %p243, %p244
      %p246 = pneg %p245
      // Predicated region
      $region41: #{moe_forward.1} parent=5 // pred_check
        _
      $region42: #{moe_forward.1} parent=5 // pred_check_branch
        %248 = sbr.rel (%p245) target = $region44
      $region43: #{moe_forward.1} parent=5 // pred_region
        %s249 = ssub.s32 %s20, 1
        %s250 = smul.u32 2, %s29
        %p251 = scmp.lt.s32.totalorder %s250, 1
        %s252 = scalar_select %p251, %s250, 1
        %s253 = smul.addr %s252, 4
        %s254 = scalar_lea.vmem %s1, %s253
        %p255 = pneg %p58
        %p256 = pneg %p55
        %p257 = pneg %p79
        %p258 = pneg %p76
        %p259 = pneg %p100
        %p260 = pneg %p97
        %p261 = pneg %p121
        %p262 = pneg %p118
        %p263 = pneg %p142
        %p264 = pneg %p139
        %s265 = smul.u32 2, %s29
        %p266 = scmp.lt.s32.totalorder %s265, 1
        %s267 = scalar_select %p266, %s265, 1
        %s268 = smul.addr %s267, 8
        %s269 = scalar_lea.vmem %s6, %s268
        %p270 = pneg %p168
        %p271 = pneg %p165
        %p272 = pneg %p194
        %p273 = pneg %p191
        %s274 = smul.u32 2, %s29
        %p275 = scmp.lt.s32.totalorder %s274, 1
        %s276 = scalar_select %p275, %s274, 1
        %s277 = smul.addr %s276, 4
        %s278 = scalar_lea.vmem %s1, %s277
        %s279 = smul.u32 2, %s29
        %s280 = smul.u32 2, %s29
        %p281 = scmp.lt.s32.totalorder %s280, 1
        %s282 = scalar_select %p281, %s280, 1
        %s283 = smul.addr %s282, 8
        %s284 = scalar_lea.vmem %s6, %s283
        %s285 = smul.u32 2, %s29
        %s286 = smul.u32 2, %s29
        %p288 = scmp.eq.s32.totalorder %s30, 0
        // Predicated region
        $region45: #{moe_forward.1} parent=43 // pred_check
          %p289 = pneg %p288
        $region46: #{moe_forward.1} parent=43 // pred_check_branch
          %291 = sbr.rel (%p289) target = $region48
        $region47: #{moe_forward.1} parent=43 // pred_region
          %v292 = vld [vmem:[%s278] sm:$0xf]
          %v293 = vld [vmem:[%s278 + $0x4] sm:$0xf]
          %v294 = vld [vmem:[%s2] sm:$0xf]
          %v295 = vld [vmem:[%s2 + $0x4] sm:$0xf]
          %v296 = vld [vmem:[%s2 + $0x8] sm:$0xf]
          %v297 = vld [vmem:[%s2 + $0xc] sm:$0xf]
          %v298 = vld [vmem:[%s3] sm:$0x1]
          %v300 = vlaneseq
          %v301 = vshrl.u32 %v300, 7
          %v302 = vsub.s32 0, %v301
          %v303 = vrot.slane %v298, %v302
          %v307 = vunpack.c.l.b16 %v292
          %v308 = vunpack.c.l.b16 %v293
          %v309 = vpack.c.b16 %v308, %v307
          %v314 = vunpack.c.l.b16 %v294
          %v315 = vunpack.c.l.b16 %v295
          %v316 = vunpack.c.l.b16 %v296
          %v317 = vunpack.c.l.b16 %v297
          %v318 = vpack.c.b16 %v315, %v314
          %v319 = vpack.c.b16 %v317, %v316
          %vm322 = vcmask 261120
          %v324 = vsel %vm322, %v309, 0
          %326 = vmatprep.subr.bf16.mxu0 0
          %327 = vmatpush1.bf16.msra.mxu0 0
          %328 = vmatprep.subr.bf16.mxu0 0
          %329 = vmatpush1.bf16.msra.mxu0 0
          %330 = vmatprep.subr.bf16.mxu0 0
          %331 = vmatpush1.bf16.msra.mxu0 0
          %332 = vmatprep.subr.bf16.mxu0 0
          %333 = vmatpush1.bf16.msra.mxu0 0
          %334 = vmatprep.subr.bf16.mxu0 0
          %335 = vmatpush1.bf16.msra.mxu0 0
          %336 = vmatprep.subr.bf16.mxu0 0
          %337 = vmatpush1.bf16.msra.mxu0 0
          %338 = vmatprep.subr.bf16.mxu0 0
          %339 = vmatpush1.bf16.msra.mxu0 %v319
          %340 = vmatprep.subr.bf16.mxu0 0
          %341 = vmatpush1.bf16.msra.mxu0 %v318
          %342 = vmatprep.subr.bf16.mxu0 0
          %343 = vmatpush2.bf16.msra.mxu0 0
          %344 = vmatprep.subr.bf16.mxu0 0
          %345 = vmatpush2.bf16.msra.mxu0 0
          %346 = vmatprep.subr.bf16.mxu0 0
          %347 = vmatpush2.bf16.msra.mxu0 0
          %348 = vmatprep.subr.bf16.mxu0 0
          %349 = vmatpush2.bf16.msra.mxu0 0
          %350 = vmatprep.subr.bf16.mxu0 0
          %351 = vmatpush2.bf16.msra.mxu0 0
          %352 = vmatprep.subr.bf16.mxu0 0
          %353 = vmatpush2.bf16.msra.mxu0 0
          %354 = vmatprep.subr.bf16.mxu0 0
          %355 = vmatpush2.bf16.msra.mxu0 0
          %356 = vmatprep.subr.bf16.mxu0 0
          %357 = vmatpush2.bf16.msra.mxu0 0
          %358 = vmatprep.mubr.bf16.mxu0 0
          %359 = vmatmul.mubr.bf16.gmra.mxu0 %v324
          %v360 = vpop.f32.mrf.mxu0
          %v361 = vadd.f32 %v303, %v360
          %v362 = vpop.f32.mrf.mxu0
          %v363 = vpop.f32.mrf.mxu0
          %v364 = vadd.f32 %v303, %v363
          %v365 = vpop.f32.mrf.mxu0
          %366 = vdwg.mxu0
          %367 = vst.msk [vmem:[#allocation4] sm:$0xff] %vm322, %v361
          %368 = vst.msk [vmem:[#allocation4 + $0x8] sm:$0xff] %vm322, %v364
        $region48: #{moe_forward.1} parent=43 // pred_fallthru
          _
        %s369 = sshra.s32 %s30, 7
        %s370 = sand.u32 %s30, 127
        %s371 = sadd.s32 %s369, %s29
        %s372 = smul.u32 %s371, 128
        %s373 = sshra.s32 %s30, 7
        %s374 = sand.u32 %s30, 127
        %s375 = sadd.s32 %s372, %s374
        %s376 = sld [smem:[#allocation3 + %s375]]
        %p377 = scmp.ne.s32.totalorder %s376, 0
        // Predicated region
        $region49: #{moe_forward.1} parent=43 // pred_check
          %p378 = pneg %p377
        $region50: #{moe_forward.1} parent=43 // pred_check_branch
          %380 = sbr.rel (%p378) target = $region52
        $region51: #{moe_forward.1} parent=43 // pred_region
          %s381 = smul.u32 %s30, 4
          %s382 = smul.addr %s381, 4
          %s383 = scalar_lea.vmem %s4, %s382
          %v384 = vld [vmem:[%s383] sm:$0xf]
          %v385 = vld [vmem:[%s383 + $0x4] sm:$0xf]
          %v386 = vld [vmem:[%s383 + $0x8] sm:$0xf]
          %v387 = vld [vmem:[%s383 + $0xc] sm:$0xf]
          %v388 = vld [vmem:[%s278] sm:$0xf]
          %v389 = vld [vmem:[%s278 + $0x4] sm:$0xf]
          %v390 = vld [vmem:[#allocation4] sm:$0xff]
          %v391 = vld [vmem:[#allocation4 + $0x8] sm:$0xff]
          %s392 = scalar_lea.vmem %s5, %s30
          %v393 = vld [vmem:[%s392] sm:$0x1]
          %v395 = vlaneseq
          %v396 = vshrl.u32 %v395, 7
          %v397 = vsub.s32 0, %v396
          %v398 = vrot.slane %v393, %v397
          %v402 = vunpack.c.l.b16 %v388
          %v403 = vunpack.c.l.b16 %v389
          %v404 = vpack.c.b16 %v403, %v402
          %v409 = vunpack.c.l.b16 %v384
          %v410 = vunpack.c.l.b16 %v385
          %v411 = vunpack.c.l.b16 %v386
          %v412 = vunpack.c.l.b16 %v387
          %v413 = vpack.c.b16 %v410, %v409
          %v414 = vpack.c.b16 %v412, %v411
          %vm417 = vcmask 261120
          %v419 = vsel %vm417, %v404, 0
          %421 = vmatprep.subr.bf16.mxu0 0
          %422 = vmatpush1.bf16.msra.mxu0 0
          %423 = vmatprep.subr.bf16.mxu0 0
          %424 = vmatpush1.bf16.msra.mxu0 0
          %425 = vmatprep.subr.bf16.mxu0 0
          %426 = vmatpush1.bf16.msra.mxu0 0
          %427 = vmatprep.subr.bf16.mxu0 0
          %428 = vmatpush1.bf16.msra.mxu0 0
          %429 = vmatprep.subr.bf16.mxu0 0
          %430 = vmatpush1.bf16.msra.mxu0 0
          %431 = vmatprep.subr.bf16.mxu0 0
          %432 = vmatpush1.bf16.msra.mxu0 0
          %433 = vmatprep.subr.bf16.mxu0 0
          %434 = vmatpush1.bf16.msra.mxu0 %v414
          %435 = vmatprep.subr.bf16.mxu0 0
          %436 = vmatpush1.bf16.msra.mxu0 %v413
          %437 = vmatprep.subr.bf16.mxu0 0
          %438 = vmatpush2.bf16.msra.mxu0 0
          %439 = vmatprep.subr.bf16.mxu0 0
          %440 = vmatpush2.bf16.msra.mxu0 0
          %441 = vmatprep.subr.bf16.mxu0 0
          %442 = vmatpush2.bf16.msra.mxu0 0
          %443 = vmatprep.subr.bf16.mxu0 0
          %444 = vmatpush2.bf16.msra.mxu0 0
          %445 = vmatprep.subr.bf16.mxu0 0
          %446 = vmatpush2.bf16.msra.mxu0 0
          %447 = vmatprep.subr.bf16.mxu0 0
          %448 = vmatpush2.bf16.msra.mxu0 0
          %449 = vmatprep.subr.bf16.mxu0 0
          %450 = vmatpush2.bf16.msra.mxu0 0
          %451 = vmatprep.subr.bf16.mxu0 0
          %452 = vmatpush2.bf16.msra.mxu0 0
          %453 = vmatprep.mubr.bf16.mxu0 0
          %454 = vmatmul.mubr.bf16.gmra.mxu0 %v419
          %v455 = vpop.f32.mrf.mxu0
          %v456 = vadd.f32 %v398, %v455
          %v457 = vpop.f32.mrf.mxu0
          %v458 = vpop.f32.mrf.mxu0
          %v459 = vadd.f32 %v398, %v458
          %v460 = vpop.f32.mrf.mxu0
          %461 = vdwg.mxu0
          %s462 = smul.u32 %s30, 16
          %s463 = scalar_lea.vmem %s284, %s462
          %v464 = vld [vmem:[%s463] sm:$0xff]
          %v465 = vld [vmem:[%s463 + $0x8] sm:$0xff]
          %467 = vset.pattern.permute.xlu0 0
          %468 = vperm.xlu0 %467, %v464
          %v469 = vpop.permute.xlu0 %468
          %472 = vset.pattern.permute.xlu0 0
          %473 = vperm.xlu0 %472, %v465
          %v474 = vpop.permute.xlu0 %473
          %v476 = vmul.f32 %v456, %v469
          %v477 = vmul.f32 %v459, %v474
          %v478 = vadd.f32 %v390, %v476
          %v479 = vadd.f32 %v391, %v477
          %480 = vst.msk [vmem:[#allocation4] sm:$0xff] %vm417, %v478
          %481 = vst.msk [vmem:[#allocation4 + $0x8] sm:$0xff] %vm417, %v479
        $region52: #{moe_forward.1} parent=43 // pred_fallthru
          _
        // Predicated region
        $region53: #{moe_forward.1} parent=43 // pred_check
          %p482 = pneg %p191
        $region54: #{moe_forward.1} parent=43 // pred_check_branch
          %484 = sbr.rel (%p482) target = $region56
        $region55: #{moe_forward.1} parent=43 // pred_region
          %s485 = smul.u32 2, %s29
          %s487 = ssub.s32 256, 256
          %488 = vsyncadd [#allocation5], %s487
          %s489 = smul.addr %s485, 128
          %s490 = scalar_lea.hbm %s7, %s489
          %s491 = sshll.u32 [#allocation4], 4
          %s492 = int_to_ptr.vmem [resolvable:$true] %s491
          %497 = dma.vmem_to_hbm [thread:$0]  %s492, 256, %s490, [#allocation5], 128, 128, 8
        $region56: #{moe_forward.1} parent=43 // pred_fallthru
          _
        // Predicated region
        $region57: #{moe_forward.1} parent=43 // pred_check
          %p498 = pneg %p191
        $region58: #{moe_forward.1} parent=43 // pred_check_branch
          %500 = sbr.rel (%p498) target = $region60
        $region59: #{moe_forward.1} parent=43 // pred_region
          %501 = dma.done [#allocation5], 256
        $region60: #{moe_forward.1} parent=43 // pred_fallthru
          _
      $region44: #{moe_forward.1} parent=5 // pred_fallthru
        _
      %p502 = scmp.le.s32.totalorder 2, %s20
      // Predicated region
      $region61: #{moe_forward.1} parent=5 // pred_check
        %p503 = pneg %p502
      $region62: #{moe_forward.1} parent=5 // pred_check_branch
        %505 = sbr.rel (%p503) target = $region64
      $region63: #{moe_forward.1} parent=5 // pred_region
        %s506 = ssub.s32 %s20, 2
      $region64: #{moe_forward.1} parent=5 // pred_fallthru
        _
    $region6: #{moe_forward.1} parent=1 // loop_footer
      %s24 = sadd.s32 1, %s20
    $region7: #{moe_forward.1} parent=1 // loop_footer_branch
      %19 = sbr.rel target = $region3
    $region8: #{moe_forward.1} parent=1 // loop_exit
      _
    %507 = vsyncpa [#allocation5], 1
    %s508 = scalar_lea.sflag [#allocation5], 1
    %509 = vsyncpa %s508, 1

</llo_original>
